<compile_context>
chip_gen: v6e
topology: v6e:2x2x1
jax: 0.10.0
libtpu: 0.0.40
codegen_flags: <defaults>
</compile_context>

<pallas_src>
import jax
import jax.numpy as jnp
from jax.experimental import pallas as pl
from jax.experimental.pallas import tpu as pltpu

LANES = 128
TARGET_BLOCK_ELEMS = 512 * 1024  # ~2 MiB per f32 tile (1 MiB bf16)


def _swish_kernel(x_ref, o_ref):
    # Compute in f32 (v5e VPU/EUP are f32-only; free under the HBM bound).
    x = x_ref[...].astype(jnp.float32)
    # swish(x) = x * sigmoid(x) = 0.5 * x * (tanh(0.5 * x) + 1)
    # -> one EUP transcendental per element, everything else on the VPU.
    o_ref[...] = (0.5 * x * (jnp.tanh(0.5 * x) + 1.0)).astype(o_ref.dtype)


def _choose_cols(n_padded: int) -> int:
    # Widest lane-dense last dim that divides the padded element count.
    for c in (1024, 512, 256, 128):
        if n_padded % c == 0:
            return c
    return LANES  # unreachable: n_padded is always a multiple of 128


def swish(x: jnp.ndarray) -> jnp.ndarray:
    """Elementwise swish matching PyTorch's x * torch.sigmoid(x)."""
    orig_shape = x.shape
    orig_dtype = x.dtype

    flat = x.reshape(-1)
    n = flat.shape[0]

    # Fast path: no pad / no slice when n is already a multiple of 128.
    n_lanes = pl.cdiv(n, LANES) * LANES
    padded = n_lanes != n
    if padded:
        # Ragged tail: pad only to the next multiple of 128 (tiny copy),
        # never to a full tile.
        flat = jnp.pad(flat, (0, n_lanes - n))

    cols = _choose_cols(n_lanes)
    x2d = flat.reshape(-1, cols)  # lane-dense (rows, cols), cols % 128 == 0
    rows = x2d.shape[0]

    # ~2 MiB f32 tiles; candidate row counts (512..4096) are multiples of 8,
    # so the (8, 128) block constraint holds.  Small inputs take the whole
    # array as one full-extent block.
    block_rows = min(TARGET_BLOCK_ELEMS // cols, rows)
    grid = (pl.cdiv(rows, block_rows),)

    itemsize = jnp.dtype(orig_dtype).itemsize
    n_elems = rows * cols
    cost = pl.CostEstimate(
        flops=5 * n_elems,
        transcendentals=n_elems,
        bytes_accessed=2 * n_elems * itemsize,
    )

    out2d = pl.pallas_call(
        _swish_kernel,
        out_shape=jax.ShapeDtypeStruct((rows, cols), orig_dtype),
        grid_spec=pltpu.PrefetchScalarGridSpec(
            num_scalar_prefetch=0,
            grid=grid,
            in_specs=[pl.BlockSpec((block_rows, cols), lambda i: (i, 0))],
            out_specs=pl.BlockSpec((block_rows, cols), lambda i: (i, 0)),
        ),
        compiler_params=pltpu.CompilerParams(
            dimension_semantics=("parallel",),
        ),
        cost_estimate=cost,
    )(x2d)

    out_flat = out2d.reshape(-1)
    if padded:
        out_flat = out_flat[:n]
    return out_flat.reshape(orig_shape)


if __name__ == "__main__":
    key = jax.random.PRNGKey(0)
    x = jax.random.normal(key, (2, 4, 16, 16), dtype=jnp.float32)  # NCHW

    y = swish(x)
    y = jax.block_until_ready(y)

    # Reference check against plain JAX swish (exp-form sigmoid).
    y_ref = x * jax.nn.sigmoid(x)
    assert y.shape == x.shape and y.dtype == x.dtype
    assert jnp.allclose(y, y_ref, atol=1e-5, rtol=1e-5)

    print("KERNEL_OK")
</pallas_src>

<mosaic_0001>
module attributes {stable_mosaic.version = 11 : i64} {
  func.func @_swish_kernel(%arg0: i32, %arg1: memref<2x1024xf32, #tpu.memory_space<vmem>>, %arg2: memref<2x1024xf32, #tpu.memory_space<vmem>>) attributes {dimension_semantics = [#tpu.dimension_semantics<parallel>], iteration_bounds = array<i64: 1>, scalar_prefetch = 0 : i64, scratch_operands = 0 : i64, tpu.core_type = #tpu.core_type<tc>, window_params = [{transform_indices = @transform_0, window_bounds = array<i64: 2, 1024>}, {transform_indices = @transform_1, window_bounds = array<i64: 2, 1024>}]} {
    %c0 = arith.constant 0 : index
    %c0_0 = arith.constant 0 : index
    %0 = vector.load %arg1[%c0, %c0_0] : memref<2x1024xf32, #tpu.memory_space<vmem>>, vector<2x1024xf32>
    %cst = arith.constant 5.000000e-01 : f32
    %1 = vector.broadcast %cst : f32 to vector<2x1024xf32>
    %2 = arith.mulf %1, %0 : vector<2x1024xf32>
    %cst_1 = arith.constant 5.000000e-01 : f32
    %3 = vector.broadcast %cst_1 : f32 to vector<2x1024xf32>
    %4 = arith.mulf %3, %0 : vector<2x1024xf32>
    %5 = math.tanh %4 : vector<2x1024xf32>
    %cst_2 = arith.constant 1.000000e+00 : f32
    %6 = vector.broadcast %cst_2 : f32 to vector<2x1024xf32>
    %7 = arith.addf %5, %6 : vector<2x1024xf32>
    %8 = arith.mulf %2, %7 : vector<2x1024xf32>
    %c0_3 = arith.constant 0 : index
    %c0_4 = arith.constant 0 : index
    %9 = vector.load %arg2[%c0_3, %c0_4] : memref<2x1024xf32, #tpu.memory_space<vmem>>, vector<2x1024xf32>
    tpu.vector_store %arg2[%c0_3, %c0_4], %8 {strides = array<i32>} : memref<2x1024xf32, #tpu.memory_space<vmem>>, vector<2x1024xf32>,
    return
  }
  func.func @transform_0(%arg0: i32) -> (i32, i32) {
    %c0_i32 = arith.constant 0 : i32
    %c0_i32_0 = arith.constant 0 : i32
    return %arg0, %c0_i32 : i32, i32
  }
  func.func @transform_1(%arg0: i32) -> (i32, i32) {
    %c0_i32 = arith.constant 0 : i32
    %c0_i32_0 = arith.constant 0 : i32
    return %arg0, %c0_i32 : i32, i32
  }
}

</mosaic_0001>

<llo_original>
// kernel: tpu_custom_call.1
$region0: #{tpu_custom_call.1}
  #allocation0 [shape = 'u32[]', space=smem, size = 0x4, offset = 0x4, fixed_abs, tag = 'smem constant byte address 0x4 - core index']
  #allocation1 [shape = 'u32[144,128]{1,0:T(1,128)}', space=vmem, size = 0x12000, scoped, tag = 'internal scratch']
  %s0 = inlined_call_operand.hbm [shape: f32[2,1024], index: 0, kind: input, shape index: {}]
  %s1 = inlined_call_operand.hbm [shape: f32[2,1024], index: 1, kind: output, shape index: {}]
  %s2 = sld [smem:[#allocation0]]
  $region18: #{tpu_custom_call.1} parent=0
    _
  %s4 = ssub.s32 1, %s2
  %s5 = scalar_select 0, %s4, %s2
  $region1: #{tpu_custom_call.1} parent=0
    #allocation2 [shape = 'u8[8192]{0}', space=vmem, size = 0x2000, scoped, tag = 'input window, operand 0, single buffered']
    #allocation3 [shape = 's32[1]{0}', space=sflag, size = 0x4, scoped, tag = 'scoped memory for tpu_custom_call.1']
    #allocation4 [shape = 's32[1]{0}', space=sflag, size = 0x4, scoped, tag = 'scoped memory for tpu_custom_call.1']
    #allocation5 [shape = 'u8[8192]{0}', space=vmem, size = 0x2000, scoped, tag = 'output window, operand 0, single buffered']
    %6 = vsyncpa [#allocation3], 0
    %7 = vsyncpa [#allocation4], 0
    // Predicated region
    $region2: #{tpu_custom_call.1} parent=1 // pred_check
      _
    $region3: #{tpu_custom_call.1} parent=1 // pred_check_branch
      %9 = sbr.rel (0) target = $region5
    $region4: #{tpu_custom_call.1} parent=1 // pred_region
      %s11 = ssub.s32 256, 256
      %12 = vsyncadd [#allocation3], %s11
      %s14 = sshll.u32 [#allocation2], 4
      %s15 = int_to_ptr.vmem [resolvable:$true] %s14
      %17 = dma.hbm_to_vmem [thread:$0]  %s0, 256, %s15, [#allocation3]
    $region5: #{tpu_custom_call.1} parent=1 // pred_fallthru
      _
    // Predicated region
    $region6: #{tpu_custom_call.1} parent=1 // pred_check
      _
    $region7: #{tpu_custom_call.1} parent=1 // pred_check_branch
      %19 = sbr.rel (0) target = $region9
    $region8: #{tpu_custom_call.1} parent=1 // pred_region
      %20 = dma.done [#allocation3], 256
    $region9: #{tpu_custom_call.1} parent=1 // pred_fallthru
      _
    %v21 = vld [vmem:[#allocation2] sm:$0xff]
    %v22 = vld [vmem:[#allocation2 + $0x8] sm:$0xff]
    %v23 = vmul.f32 %v21, 0.5
    %v24 = vmul.f32 %v22, 0.5
    %v25 = vtanh.pop %v23
    %v26 = vtanh.pop %v24
    %v27 = vadd.f32 %v25, 1.0
    %v28 = vadd.f32 %v26, 1.0
    %v29 = vmul.f32 %v23, %v27
    %v30 = vmul.f32 %v24, %v28
    %31 = vst [vmem:[#allocation5] sm:$0xff] %v29
    %32 = vst [vmem:[#allocation5 + $0x8] sm:$0xff] %v30
    // Predicated region
    $region10: #{tpu_custom_call.1} parent=1 // pred_check
      _
    $region11: #{tpu_custom_call.1} parent=1 // pred_check_branch
      %34 = sbr.rel (0) target = $region13
    $region12: #{tpu_custom_call.1} parent=1 // pred_region
      %s36 = ssub.s32 256, 256
      %37 = vsyncadd [#allocation4], %s36
      %s39 = sshll.u32 [#allocation5], 4
      %s40 = int_to_ptr.vmem [resolvable:$true] %s39
      %42 = dma.vmem_to_hbm [thread:$0]  %s40, 256, %s1, [#allocation4]
    $region13: #{tpu_custom_call.1} parent=1 // pred_fallthru
      _
    // Predicated region
    $region14: #{tpu_custom_call.1} parent=1 // pred_check
      _
    $region15: #{tpu_custom_call.1} parent=1 // pred_check_branch
      %44 = sbr.rel (0) target = $region17
    $region16: #{tpu_custom_call.1} parent=1 // pred_region
      %45 = dma.done [#allocation4], 256
    $region17: #{tpu_custom_call.1} parent=1 // pred_fallthru
      _
    %46 = vsyncpa [#allocation3], 1
    %47 = vsyncpa [#allocation4], 1

</llo_original>
